<compile_context>
chip_gen: v7x
topology: tpu7x:2x2x1
jax: 0.10.0
libtpu: 0.0.40
codegen_flags: <defaults>
</compile_context>

<pallas_src>
import jax
import jax.numpy as jnp
from jax.experimental import pallas as pl
from jax.experimental.pallas import tpu as pltpu


_LANE = 1024                    # last-dim width: multiple of 128 -> unmasked stores
_TILE_BYTES = 2 * 1024 * 1024   # ~2 MiB/tile; safe on v5e/v6e/v7x with 2x buffering


def _sparse_mask_kernel(thr_ref, x_ref, o_ref):
    """Elementwise hot path: o = x * (|x| > thr)."""
    thr = thr_ref[0].astype(x_ref.dtype)   # scalar SMEM read + scalar cast
    x = x_ref[...]
    mask = (jnp.abs(x) > thr).astype(x.dtype)
    o_ref[...] = x * mask


def _sparse_forward_flat(x_flat, threshold):
    """Apply the sparsity mask to a flat (total,) array via a lane-dense 2-D slab."""
    (total,) = x_flat.shape
    dtype = x_flat.dtype
    itemsize = jnp.dtype(dtype).itemsize

    rows = pl.cdiv(total, _LANE)
    tile_rows = max(1, _TILE_BYTES // (_LANE * itemsize))
    if rows <= tile_rows:
        # Single tile: block equals the full row extent (8-row rule not required).
        tile_rows = rows
        rows_padded = rows
    else:
        tile_rows = max(8, (tile_rows // 8) * 8)           # multiple of 8 sublanes
        rows_padded = pl.cdiv(rows, tile_rows) * tile_rows

    padded_total = rows_padded * _LANE
    if padded_total != total:
        x_flat = jnp.pad(x_flat, (0, padded_total - total))
    x2d = x_flat.reshape(rows_padded, _LANE)

    thr_arr = jnp.asarray(threshold, dtype=jnp.float32).reshape(1)

    out2d = pl.pallas_call(
        _sparse_mask_kernel,
        out_shape=jax.ShapeDtypeStruct((rows_padded, _LANE), dtype),
        grid_spec=pltpu.PrefetchScalarGridSpec(
            num_scalar_prefetch=0,
            grid=(rows_padded // tile_rows,),
            in_specs=[
                pl.BlockSpec(memory_space=pltpu.MemorySpace.SMEM),   # scalar threshold
                pl.BlockSpec((tile_rows, _LANE), lambda i: (i, 0)),  # input rows
            ],
            out_specs=pl.BlockSpec((tile_rows, _LANE), lambda i: (i, 0)),
        ),
        compiler_params=pltpu.CompilerParams(
            dimension_semantics=("parallel",)),
    )(thr_arr, x2d)

    return out2d.reshape(-1)[:total]


class SpatiallySparseAcrossChannelsJax:
    """JAX/Pallas port of SpatiallySparseAcrossChannels (forward pass).

    Parameters mirror the PyTorch __init__: a single non-trainable threshold,
    deterministically initialized to zero (torch.zeros(1)).
    """

    def __init__(self, sparsity, num_channels, momentum=0.1,
                 by_magnitude=True, discontinuity_mode='none'):
        del num_channels  # the inner SpatiallySparse uses num_channels=1
        assert discontinuity_mode == 'none', "only 'none' mode implemented"
        assert by_magnitude, "only by_magnitude=True path implemented"
        self.sparsity = sparsity
        self.momentum = momentum
        self.thresholds = jnp.zeros((1,), dtype=jnp.float32)

    def forward(self, x, training=False):
        N, C, L = x.shape
        x_flat = x.reshape(-1)

        if training:
            # Glue (kthvalue -> EMA threshold update), not the Pallas hot path.
            # TODO(synk): kthvalue/selection has no clean Pallas equivalent; plain JAX.
            to_drop = max(1, int((N * C) * L * self.sparsity))
            kth = jnp.sort(jnp.abs(x_flat))[to_drop - 1]
            self.thresholds = (self.thresholds * (1.0 - self.momentum)
                               + kth * self.momentum)

        out_flat = _sparse_forward_flat(x_flat, self.thresholds)
        return out_flat.reshape(N, C, L)


def _reference_forward(x, threshold):
    mask = jnp.abs(x) > threshold[0]
    return x * mask.astype(x.dtype)


if __name__ == "__main__":
    key = jax.random.PRNGKey(0)
    N, C, L = 2, 4, 16
    x = jax.random.normal(key, (N, C, L), dtype=jnp.float32)

    module = SpatiallySparseAcrossChannelsJax(sparsity=0.5, num_channels=C)

    # Eval-mode forward with the deterministically initialized (zero) threshold.
    out = jax.block_until_ready(module.forward(x, training=False))
    ref = _reference_forward(x, module.thresholds)
    assert out.shape == (N, C, L)
    assert jnp.allclose(out, ref), "mismatch vs reference (eval)"

    # One training-style pass: threshold EMA update in plain-JAX glue,
    # masking hot path still in the Pallas kernel.
    out_train = jax.block_until_ready(module.forward(x, training=True))
    ref_train = _reference_forward(x, module.thresholds)
    assert jnp.allclose(out_train, ref_train), "mismatch vs reference (train)"

    # A second shape that exercises the multi-tile (grid > 1) row-tiled path
    # with a nonzero threshold.
    key2 = jax.random.PRNGKey(1)
    N2, C2, L2 = 8, 64, 1500
    x2 = jax.random.normal(key2, (N2, C2, L2), dtype=jnp.float32)
    module2 = SpatiallySparseAcrossChannelsJax(sparsity=0.25, num_channels=C2)
    module2.thresholds = jnp.asarray([0.7], dtype=jnp.float32)
    out2 = jax.block_until_ready(module2.forward(x2, training=False))
    assert jnp.allclose(out2, _reference_forward(x2, module2.thresholds)), \
        "mismatch vs reference (multi-tile)"

    print("KERNEL_OK")
</pallas_src>

<mosaic_0001>
module attributes {stable_mosaic.version = 11 : i64} {
  func.func @_sparse_mask_kernel(%arg0: i32, %arg1: memref<1xf32, #tpu.memory_space<smem>>, %arg2: memref<1x1024xf32, #tpu.memory_space<vmem>>, %arg3: memref<1x1024xf32, #tpu.memory_space<vmem>>) attributes {dimension_semantics = [#tpu.dimension_semantics<parallel>], iteration_bounds = array<i64: 1>, scalar_prefetch = 0 : i64, scratch_operands = 0 : i64, tpu.core_type = #tpu.core_type<tc>, window_params = [{transform_indices = @transform_0, window_bounds = array<i64: 1>}, {transform_indices = @transform_1, window_bounds = array<i64: 1, 1024>}, {transform_indices = @transform_2, window_bounds = array<i64: 1, 1024>}]} {
    %c0 = arith.constant 0 : index
    %0 = memref.load %arg1[%c0] : memref<1xf32, #tpu.memory_space<smem>>
    %c0_0 = arith.constant 0 : index
    %c0_1 = arith.constant 0 : index
    %1 = vector.load %arg2[%c0_0, %c0_1] : memref<1x1024xf32, #tpu.memory_space<vmem>>, vector<1x1024xf32>
    %2 = math.absf %1 : vector<1x1024xf32>
    %3 = vector.broadcast %0 : f32 to vector<1x1024xf32>
    %4 = arith.cmpf ogt, %2, %3 : vector<1x1024xf32>
    %5 = arith.extui %4 : vector<1x1024xi1> to vector<1x1024xi32>
    %6 = arith.sitofp %5 : vector<1x1024xi32> to vector<1x1024xf32>
    %7 = arith.mulf %1, %6 : vector<1x1024xf32>
    %c0_2 = arith.constant 0 : index
    %c0_3 = arith.constant 0 : index
    %8 = vector.load %arg3[%c0_2, %c0_3] : memref<1x1024xf32, #tpu.memory_space<vmem>>, vector<1x1024xf32>
    tpu.vector_store %arg3[%c0_2, %c0_3], %7 {strides = array<i32>} : memref<1x1024xf32, #tpu.memory_space<vmem>>, vector<1x1024xf32>,
    return
  }
  func.func @transform_0(%arg0: i32) -> i32 {
    %c0_i32 = arith.constant 0 : i32
    %c0_i32_0 = arith.constant 0 : i32
    return %c0_i32 : i32
  }
  func.func @transform_1(%arg0: i32) -> (i32, i32) {
    %c0_i32 = arith.constant 0 : i32
    %c0_i32_0 = arith.constant 0 : i32
    return %arg0, %c0_i32 : i32, i32
  }
  func.func @transform_2(%arg0: i32) -> (i32, i32) {
    %c0_i32 = arith.constant 0 : i32
    %c0_i32_0 = arith.constant 0 : i32
    return %arg0, %c0_i32 : i32, i32
  }
}

</mosaic_0001>

<llo_original>
// kernel: tpu_custom_call.1
$region0: #{tpu_custom_call.1}
  #allocation0 [shape = 'u32[]', space=smem, size = 0x4, offset = 0x4, fixed_abs, tag = 'smem constant byte address 0x4 - core index']
  #allocation1 [shape = 'u32[144,128]{1,0:T(1,128)}', space=vmem, size = 0x12000, scoped, tag = 'internal scratch']
  #allocation2 [shape = 'f32[1]{0:T(128)S(6)}', space=smem, size = 0x200, scoped, tag = 'scoped memory for tpu_custom_call.1']
  %s0 = inlined_call_operand.<no memory space> [shape: f32[1], index: 0, kind: input, shape index: {}]
  %s1 = inlined_call_operand.hbm [shape: f32[1,1024], index: 1, kind: input, shape index: {}]
  %s2 = inlined_call_operand.hbm [shape: f32[1,1024], index: 2, kind: output, shape index: {}]
  %s3 = sld [smem:[#allocation0]]
  $region22: #{tpu_custom_call.1} parent=0
    _
  %s5 = ssub.s32 1, %s3
  %s6 = scalar_select 0, %s5, %s3
  %7 = sst [smem:[#allocation2]] %s0
  $region1: #{tpu_custom_call.1} parent=0
    #allocation3 [shape = 'u8[4096]{0}', space=vmem, size = 0x1000, scoped, tag = 'input window, operand 1, single buffered']
    #allocation4 [shape = 's32[1]{0}', space=sflag, size = 0x4, scoped, tag = 'scoped memory for tpu_custom_call.1']
    #allocation5 [shape = 's32[1]{0}', space=sflag, size = 0x4, scoped, tag = 'scoped memory for tpu_custom_call.1']
    #allocation6 [shape = 'u8[4096]{0}', space=vmem, size = 0x1000, scoped, tag = 'output window, operand 0, single buffered']
    %8 = vsyncpa [#allocation4], 0
    %9 = vsyncpa [#allocation5], 0
    // Predicated region
    $region2: #{tpu_custom_call.1} parent=1 // pred_check
      _
    $region3: #{tpu_custom_call.1} parent=1 // pred_check_branch
      %11 = sbr.rel (0) target = $region5
    $region4: #{tpu_custom_call.1} parent=1 // pred_region
      _
    $region5: #{tpu_custom_call.1} parent=1 // pred_fallthru
      _
    // Predicated region
    $region6: #{tpu_custom_call.1} parent=1 // pred_check
      _
    $region7: #{tpu_custom_call.1} parent=1 // pred_check_branch
      %13 = sbr.rel (0) target = $region9
    $region8: #{tpu_custom_call.1} parent=1 // pred_region
      %s15 = ssub.s32 128, 128
      %16 = vsyncadd [#allocation4], %s15
      %s18 = sshll.u32 [#allocation3], 4
      %s19 = int_to_ptr.vmem [resolvable:$true] %s18
      %21 = dma.hbm_to_vmem [thread:$0]  %s1, 128, %s19, [#allocation4]
    $region9: #{tpu_custom_call.1} parent=1 // pred_fallthru
      _
    // Predicated region
    $region10: #{tpu_custom_call.1} parent=1 // pred_check
      _
    $region11: #{tpu_custom_call.1} parent=1 // pred_check_branch
      %23 = sbr.rel (0) target = $region13
    $region12: #{tpu_custom_call.1} parent=1 // pred_region
      %24 = dma.done [#allocation4], 128
    $region13: #{tpu_custom_call.1} parent=1 // pred_fallthru
      _
    %s25 = sld [smem:[#allocation2]]
    %v26 = vld [vmem:[#allocation3] sm:$0xff]
    %v27 = vand.u32 2147483647, %v26
    %v28 = vstv %s25
    %vm29 = vcmp.gt.f32.partialorder %v27, %v28
    %v30 = vsel %vm29, 1, 0
    %v31 = vcvt.s32.f32 %v30
    %v32 = vmul.f32 %v26, %v31
    %33 = vst [vmem:[#allocation6] sm:$0xff] %v32
    // Predicated region
    $region14: #{tpu_custom_call.1} parent=1 // pred_check
      _
    $region15: #{tpu_custom_call.1} parent=1 // pred_check_branch
      %35 = sbr.rel (0) target = $region17
    $region16: #{tpu_custom_call.1} parent=1 // pred_region
      %s37 = ssub.s32 128, 128
      %38 = vsyncadd [#allocation5], %s37
      %s40 = sshll.u32 [#allocation6], 4
      %s41 = int_to_ptr.vmem [resolvable:$true] %s40
      %43 = dma.vmem_to_hbm [thread:$0]  %s41, 128, %s2, [#allocation5]
    $region17: #{tpu_custom_call.1} parent=1 // pred_fallthru
      _
    // Predicated region
    $region18: #{tpu_custom_call.1} parent=1 // pred_check
      _
    $region19: #{tpu_custom_call.1} parent=1 // pred_check_branch
      %45 = sbr.rel (0) target = $region21
    $region20: #{tpu_custom_call.1} parent=1 // pred_region
      %46 = dma.done [#allocation5], 128
    $region21: #{tpu_custom_call.1} parent=1 // pred_fallthru
      _
    %47 = vsyncpa [#allocation4], 1
    %48 = vsyncpa [#allocation5], 1

</llo_original>
